<compile_context>
chip_gen: v7x
topology: tpu7x:2x2x1
jax: 0.10.0
libtpu: 0.0.40
codegen_flags: <defaults>
</compile_context>

<pallas_src>
import functools
import math

import jax
import jax.numpy as jnp
from jax import lax
from jax.experimental import pallas as pl
from jax.experimental.pallas import tpu as pltpu

NEG_SENTINEL = -1e30  # finite mask value: avoids (-inf) - (-inf) NaNs when tiling


def _round_up(x, m):
    return ((x + m - 1) // m) * m


def _default_tile():
    """256 fills the 2x256x256 MXU on v6e/v7x; 128 maps cleanly to v5e's 4x128x128."""
    try:
        kind = jax.devices()[0].device_kind.lower()
    except Exception:
        return 256
    if "v5e" in kind or "v5 lite" in kind or "v5lite" in kind:
        return 128
    return 256


# --------------------------------------------------------------------------
# Kernel 1: hoisted QKV projection (each token projected exactly once).
# --------------------------------------------------------------------------
def _qkv_proj_kernel(x_ref, w_ref, q_ref, k_ref, v_ref, *, dp):
    x = x_ref[0]                                               # (ts, d_in), bf16
    # Ref-level column slices of the fused weight (128-lane aligned -> free views).
    q_ref[0] = jnp.dot(x, w_ref[:, :dp],
                       preferred_element_type=jnp.float32).astype(q_ref.dtype)
    k_ref[0] = jnp.dot(x, w_ref[:, dp:2 * dp],
                       preferred_element_type=jnp.float32).astype(k_ref.dtype)
    v_ref[0] = jnp.dot(x, w_ref[:, 2 * dp:],
                       preferred_element_type=jnp.float32).astype(v_ref.dtype)


# --------------------------------------------------------------------------
# Kernel 2: flash attention over a flattened lower-triangular (qi, kv) grid.
# --------------------------------------------------------------------------
def _online_softmax_update(q, k, v, m_scr, l_scr, acc_scr, *, masked, ts,
                           compute_dtype):
    # Q @ K^T with the transpose absorbed into the contraction (no XLU pass).
    s = lax.dot_general(q, k, (((1,), (1,)), ((), ())),
                        preferred_element_type=jnp.float32)    # (ts, ts) f32
    if masked:
        # Only the diagonal tile ever needs the causal mask.
        row = lax.broadcasted_iota(jnp.int32, (ts, ts), 0)
        col = lax.broadcasted_iota(jnp.int32, (ts, ts), 1)
        s = jnp.where(col > row, NEG_SENTINEL, s)

    # Online (flash) softmax update, all in f32 on the VPU/EUP.
    m_prev = m_scr[...]
    m_new = jnp.maximum(m_prev, jnp.max(s, axis=-1, keepdims=True))
    alpha = jnp.exp(m_prev - m_new)
    p = jnp.exp(s - m_new)
    l_scr[...] = alpha * l_scr[...] + jnp.sum(p, axis=-1, keepdims=True)
    acc_scr[...] = alpha * acc_scr[...] + jnp.dot(
        p.astype(compute_dtype), v, preferred_element_type=jnp.float32)
    m_scr[...] = m_new


def _flash_causal_kernel(qi_tbl, kv_tbl, q_ref, k_ref, v_ref, o_ref,
                         m_scr, l_scr, acc_scr, *, ts, compute_dtype,
                         approx_recip):
    step = pl.program_id(1)
    qi = qi_tbl[step]
    kv = kv_tbl[step]

    @pl.when(kv == 0)
    def _init():
        m_scr[...] = jnp.full_like(m_scr, NEG_SENTINEL)
        l_scr[...] = jnp.zeros_like(l_scr)
        acc_scr[...] = jnp.zeros_like(acc_scr)

    q = q_ref[0]     # (ts, dp) bf16, scale already folded into W_query
    k = k_ref[0]
    v = v_ref[0]

    @pl.when(kv < qi)        # off-diagonal tiles: mask never bites -> skip it
    def _off_diag():
        _online_softmax_update(q, k, v, m_scr, l_scr, acc_scr,
                               masked=False, ts=ts, compute_dtype=compute_dtype)

    @pl.when(kv == qi)       # diagonal tile: mask + finalize (last step of this qi)
    def _diag_and_finalize():
        _online_softmax_update(q, k, v, m_scr, l_scr, acc_scr,
                               masked=True, ts=ts, compute_dtype=compute_dtype)
        # TODO(synk): nn.Dropout on attn_weights is identity in eval mode;
        # train-mode dropout would need pltpu.prng_seed/prng_random_bits.
        if approx_recip:
            inv_l = pl.reciprocal(l_scr[...], approx=True)
        else:
            inv_l = 1.0 / l_scr[...]
        o_ref[0] = (acc_scr[...] * inv_l).astype(o_ref.dtype)


# --------------------------------------------------------------------------
# Wrapper
# --------------------------------------------------------------------------
def causal_attention(x, wq, wk, wv, *, tile=None, compute_dtype=jnp.bfloat16,
                     approx_reciprocal=True):
    """x: [B, T, d_in]; wq/wk/wv: [d_in, d_out] -> [B, T, d_out] (causal attn)."""
    B, T, d_in = x.shape
    d_out = wq.shape[1]
    scale = 1.0 / math.sqrt(d_out)

    if tile is None:
        tile = _default_tile()

    # Lane-dense head dim: pad d_out up to a multiple of 128 so q/k/v tiles and
    # the output store are unmasked, 128-lane-aligned slabs (zero cols are inert).
    dp = max(128, _round_up(d_out, 128))

    # bf16 packs two rows per sublane -> round sequence tiles to 16.
    row_mult = 16 if jnp.dtype(compute_dtype).itemsize < 4 else 8
    ts = min(tile, _round_up(T, row_mult))
    Tp = _round_up(T, ts)
    if Tp != T:
        x = jnp.pad(x, ((0, 0), (0, Tp - T), (0, 0)))  # zero-pad tokens
    nt = Tp // ts

    def pad_cols(w):
        return jnp.pad(w, ((0, 0), (0, dp - d_out)))

    # Fold the softmax scale into W_query (cheapest place), pad to dp lanes,
    # fuse into one (d_in, 3*dp) weight (single DMA for the projection kernel).
    w_fused = jnp.concatenate(
        [pad_cols(wq * scale), pad_cols(wk), pad_cols(wv)],
        axis=1).astype(compute_dtype)
    x_c = x.astype(compute_dtype)
    itemsize_c = jnp.dtype(compute_dtype).itemsize

    # ---- Kernel 1: QKV projection ------------------------------------------
    proj_cost = pl.CostEstimate(
        flops=int(2 * B * Tp * d_in * 3 * dp),
        transcendentals=0,
        bytes_accessed=int(x_c.size * itemsize_c
                           + w_fused.size * itemsize_c
                           + 3 * B * Tp * dp * itemsize_c),
    )
    q, k, v = pl.pallas_call(
        functools.partial(_qkv_proj_kernel, dp=dp),
        out_shape=tuple(jax.ShapeDtypeStruct((B, Tp, dp), compute_dtype)
                        for _ in range(3)),
        grid_spec=pltpu.PrefetchScalarGridSpec(
            num_scalar_prefetch=0,
            grid=(B, nt),
            in_specs=[
                pl.BlockSpec((1, ts, d_in), lambda b, i: (b, i, 0)),     # x tile
                pl.BlockSpec((d_in, 3 * dp), lambda b, i: (0, 0)),       # fused W
            ],
            out_specs=tuple(pl.BlockSpec((1, ts, dp), lambda b, i: (b, i, 0))
                            for _ in range(3)),
        ),
        compiler_params=pltpu.CompilerParams(
            dimension_semantics=("parallel", "parallel"),
            vmem_limit_bytes=32 * 1024 * 1024),
        cost_estimate=proj_cost,
    )(x_c, w_fused)

    # ---- Kernel 2: flash attention over the lower-triangular tile set ------
    # For each q tile, kv runs 0..qi with the diagonal last, so there are no
    # dead grid steps / DMAs and finalize lands on the output-block boundary.
    tri = [(qi, kv) for qi in range(nt) for kv in range(qi + 1)]
    qi_tbl = jnp.asarray([p[0] for p in tri], dtype=jnp.int32)
    kv_tbl = jnp.asarray([p[1] for p in tri], dtype=jnp.int32)
    n_steps = len(tri)

    attn_cost = pl.CostEstimate(
        flops=int(B * n_steps * (2 * ts * ts * dp   # QK^T
                                 + 2 * ts * ts * dp)),  # PV
        transcendentals=int(B * n_steps * ts * ts),
        bytes_accessed=int(3 * B * Tp * dp * itemsize_c
                           + B * Tp * dp * x.dtype.itemsize),
    )

    kernel = functools.partial(_flash_causal_kernel, ts=ts,
                               compute_dtype=compute_dtype,
                               approx_recip=approx_reciprocal)

    out = pl.pallas_call(
        kernel,
        out_shape=jax.ShapeDtypeStruct((B, Tp, dp), x.dtype),
        grid_spec=pltpu.PrefetchScalarGridSpec(
            num_scalar_prefetch=2,                      # (qi_tbl, kv_tbl) in SMEM
            grid=(B, n_steps),
            in_specs=[
                pl.BlockSpec((1, ts, dp), lambda b, s, qi_t, kv_t: (b, qi_t[s], 0)),  # Q
                pl.BlockSpec((1, ts, dp), lambda b, s, qi_t, kv_t: (b, kv_t[s], 0)),  # K
                pl.BlockSpec((1, ts, dp), lambda b, s, qi_t, kv_t: (b, kv_t[s], 0)),  # V
            ],
            out_specs=pl.BlockSpec((1, ts, dp),
                                   lambda b, s, qi_t, kv_t: (b, qi_t[s], 0)),
            scratch_shapes=[
                pltpu.VMEM((ts, 1), jnp.float32),   # running max m
                pltpu.VMEM((ts, 1), jnp.float32),   # running sum l
                pltpu.VMEM((ts, dp), jnp.float32),  # output accumulator
            ],
        ),
        compiler_params=pltpu.CompilerParams(
            # batch axis is independent (megacore-shardable on v7x); the
            # flattened triangular kv-walk is sequential.
            dimension_semantics=("parallel", "arbitrary"),
            vmem_limit_bytes=32 * 1024 * 1024),
        cost_estimate=attn_cost,
    )(qi_tbl, kv_tbl, q, k, v)

    return out[:, :T, :d_out]


def _reference(x, wq, wk, wv):
    q = x @ wq
    k = x @ wk
    v = x @ wv
    scores = jnp.einsum("btd,bsd->bts", q, k)
    T = x.shape[1]
    mask = jnp.triu(jnp.ones((T, T), dtype=bool), k=1)
    scores = jnp.where(mask[None], -jnp.inf, scores)
    w = jax.nn.softmax(scores / math.sqrt(wq.shape[1]), axis=-1)
    return jnp.einsum("bts,bsd->btd", w, v)


if __name__ == "__main__":
    # Exact inputs from the module source: (6, 3), stacked twice -> (2, 6, 3)
    inputs = jnp.array(
        [[0.43, 0.15, 0.89],
         [0.55, 0.87, 0.66],
         [0.57, 0.85, 0.64],
         [0.22, 0.58, 0.33],
         [0.77, 0.25, 0.10],
         [0.05, 0.80, 0.55]], dtype=jnp.float32)
    x = jnp.stack((inputs, inputs), axis=0)            # (B=2, T=6, d_in=3)

    d_in, d_out = 3, 2
    key = jax.random.PRNGKey(0)
    kq, kk, kv = jax.random.split(key, 3)
    # deterministic init matching nn.Linear's uniform(-1/sqrt(d_in), 1/sqrt(d_in))
    bound = 1.0 / math.sqrt(d_in)
    wq = jax.random.uniform(kq, (d_in, d_out), jnp.float32, -bound, bound)
    wk = jax.random.uniform(kk, (d_in, d_out), jnp.float32, -bound, bound)
    wv = jax.random.uniform(kv, (d_in, d_out), jnp.float32, -bound, bound)

    out = jax.block_until_ready(causal_attention(x, wq, wk, wv))
    ref = _reference(x, wq, wk, wv)
    assert out.shape == (2, 6, d_out)
    # tolerance accounts for bf16 MXU operands + EUP approx reciprocal
    assert jnp.allclose(out, ref, atol=2e-2, rtol=2e-2), "mismatch vs reference"

    print("KERNEL_OK")
</pallas_src>

<mosaic_0001>
module attributes {stable_mosaic.version = 11 : i64} {
  func.func @_qkv_proj_kernel(%arg0: i32, %arg1: i32, %arg2: memref<1x16x3xbf16, #tpu.memory_space<vmem>>, %arg3: memref<3x384xbf16, #tpu.memory_space<vmem>>, %arg4: memref<1x16x128xbf16, #tpu.memory_space<vmem>>, %arg5: memref<1x16x128xbf16, #tpu.memory_space<vmem>>, %arg6: memref<1x16x128xbf16, #tpu.memory_space<vmem>>) attributes {dimension_semantics = [#tpu.dimension_semantics<parallel>, #tpu.dimension_semantics<parallel>], iteration_bounds = array<i64: 2, 1>, scalar_prefetch = 0 : i64, scratch_operands = 0 : i64, tpu.core_type = #tpu.core_type<tc>, window_params = [{transform_indices = @transform_0, window_bounds = array<i64: 1, 16, 3>}, {pipeline_mode = #tpu.pipeline_mode<synchronous>, transform_indices = @transform_1, window_bounds = array<i64: 3, 384>}, {transform_indices = @transform_2, window_bounds = array<i64: 1, 16, 128>}, {transform_indices = @transform_3, window_bounds = array<i64: 1, 16, 128>}, {transform_indices = @transform_4, window_bounds = array<i64: 1, 16, 128>}]} {
    %c0 = arith.constant 0 : index
    %c0_0 = arith.constant 0 : index
    %c0_1 = arith.constant 0 : index
    %0 = vector.load %arg2[%c0, %c0_0, %c0_1] : memref<1x16x3xbf16, #tpu.memory_space<vmem>>, vector<1x16x3xbf16>
    %1 = vector.shape_cast %0 : vector<1x16x3xbf16> to vector<16x3xbf16>
    %c0_2 = arith.constant 0 : index
    %c0_3 = arith.constant 0 : index
    %2 = vector.load %arg3[%c0_2, %c0_3] : memref<3x384xbf16, #tpu.memory_space<vmem>>, vector<3x128xbf16>
    %cst = arith.constant dense<0.000000e+00> : vector<16x128xf32>
    %3 = tpu.matmul %1, %2, %cst {dimension_numbers = #tpu.dot_dimension_numbers<[1], [0], [0], [1], [0, 0, 1, 1], [], []>} : vector<16x3xbf16>, vector<3x128xbf16>, vector<16x128xf32> -> vector<16x128xf32>
    %4 = arith.truncf %3 : vector<16x128xf32> to vector<16x128xbf16>
    %c0_4 = arith.constant 0 : index
    %c0_5 = arith.constant 0 : index
    %c0_6 = arith.constant 0 : index
    %5 = vector.load %arg4[%c0_4, %c0_5, %c0_6] : memref<1x16x128xbf16, #tpu.memory_space<vmem>>, vector<1x16x128xbf16>
    %6 = vector.shape_cast %5 : vector<1x16x128xbf16> to vector<16x128xbf16>
    %7 = vector.shape_cast %4 : vector<16x128xbf16> to vector<1x16x128xbf16>
    tpu.vector_store %arg4[%c0_4, %c0_5, %c0_6], %7 {strides = array<i32>} : memref<1x16x128xbf16, #tpu.memory_space<vmem>>, vector<1x16x128xbf16>,
    %c0_7 = arith.constant 0 : index
    %c128 = arith.constant 128 : index
    %8 = vector.load %arg3[%c0_7, %c128] : memref<3x384xbf16, #tpu.memory_space<vmem>>, vector<3x128xbf16>
    %cst_8 = arith.constant dense<0.000000e+00> : vector<16x128xf32>
    %9 = tpu.matmul %1, %8, %cst_8 {dimension_numbers = #tpu.dot_dimension_numbers<[1], [0], [0], [1], [0, 0, 1, 1], [], []>} : vector<16x3xbf16>, vector<3x128xbf16>, vector<16x128xf32> -> vector<16x128xf32>
    %10 = arith.truncf %9 : vector<16x128xf32> to vector<16x128xbf16>
    %c0_9 = arith.constant 0 : index
    %c0_10 = arith.constant 0 : index
    %c0_11 = arith.constant 0 : index
    %11 = vector.load %arg5[%c0_9, %c0_10, %c0_11] : memref<1x16x128xbf16, #tpu.memory_space<vmem>>, vector<1x16x128xbf16>
    %12 = vector.shape_cast %11 : vector<1x16x128xbf16> to vector<16x128xbf16>
    %13 = vector.shape_cast %10 : vector<16x128xbf16> to vector<1x16x128xbf16>
    tpu.vector_store %arg5[%c0_9, %c0_10, %c0_11], %13 {strides = array<i32>} : memref<1x16x128xbf16, #tpu.memory_space<vmem>>, vector<1x16x128xbf16>,
    %c0_12 = arith.constant 0 : index
    %c256 = arith.constant 256 : index
    %14 = vector.load %arg3[%c0_12, %c256] : memref<3x384xbf16, #tpu.memory_space<vmem>>, vector<3x128xbf16>
    %cst_13 = arith.constant dense<0.000000e+00> : vector<16x128xf32>
    %15 = tpu.matmul %1, %14, %cst_13 {dimension_numbers = #tpu.dot_dimension_numbers<[1], [0], [0], [1], [0, 0, 1, 1], [], []>} : vector<16x3xbf16>, vector<3x128xbf16>, vector<16x128xf32> -> vector<16x128xf32>
    %16 = arith.truncf %15 : vector<16x128xf32> to vector<16x128xbf16>
    %c0_14 = arith.constant 0 : index
    %c0_15 = arith.constant 0 : index
    %c0_16 = arith.constant 0 : index
    %17 = vector.load %arg6[%c0_14, %c0_15, %c0_16] : memref<1x16x128xbf16, #tpu.memory_space<vmem>>, vector<1x16x128xbf16>
    %18 = vector.shape_cast %17 : vector<1x16x128xbf16> to vector<16x128xbf16>
    %19 = vector.shape_cast %16 : vector<16x128xbf16> to vector<1x16x128xbf16>
    tpu.vector_store %arg6[%c0_14, %c0_15, %c0_16], %19 {strides = array<i32>} : memref<1x16x128xbf16, #tpu.memory_space<vmem>>, vector<1x16x128xbf16>,
    return
  }
  func.func @transform_0(%arg0: i32, %arg1: i32) -> (i32, i32, i32) {
    %c0_i32 = arith.constant 0 : i32
    %c0_i32_0 = arith.constant 0 : i32
    return %arg0, %arg1, %c0_i32 : i32, i32, i32
  }
  func.func @transform_1(%arg0: i32, %arg1: i32) -> (i32, i32) {
    %c0_i32 = arith.constant 0 : i32
    %c0_i32_0 = arith.constant 0 : i32
    %c0_i32_1 = arith.constant 0 : i32
    return %c0_i32, %c0_i32_0 : i32, i32
  }
  func.func @transform_2(%arg0: i32, %arg1: i32) -> (i32, i32, i32) {
    %c0_i32 = arith.constant 0 : i32
    %c0_i32_0 = arith.constant 0 : i32
    return %arg0, %arg1, %c0_i32 : i32, i32, i32
  }
  func.func @transform_3(%arg0: i32, %arg1: i32) -> (i32, i32, i32) {
    %c0_i32 = arith.constant 0 : i32
    %c0_i32_0 = arith.constant 0 : i32
    return %arg0, %arg1, %c0_i32 : i32, i32, i32
  }
  func.func @transform_4(%arg0: i32, %arg1: i32) -> (i32, i32, i32) {
    %c0_i32 = arith.constant 0 : i32
    %c0_i32_0 = arith.constant 0 : i32
    return %arg0, %arg1, %c0_i32 : i32, i32, i32
  }
}

</mosaic_0001>

<llo_original>
// kernel: tpu_custom_call.1
$region0: #{tpu_custom_call.1}
  #allocation0 [shape = 'u32[]', space=smem, size = 0x4, offset = 0x4, fixed_abs, tag = 'smem constant byte address 0x4 - core index']
  #allocation1 [shape = 'u32[144,128]{1,0:T(1,128)}', space=vmem, size = 0x12000, scoped, tag = 'internal scratch']
  %s0 = inlined_call_operand.vmem [shape: bf16[2,16,3], index: 0, kind: input, shape index: {}]
  %s1 = inlined_call_operand.vmem [shape: bf16[3,384], index: 1, kind: input, shape index: {}]
  %s2 = inlined_call_operand.hbm [shape: bf16[2,16,128], index: 2, kind: output, shape index: {0}]
  %s3 = inlined_call_operand.hbm [shape: bf16[2,16,128], index: 3, kind: output, shape index: {1}]
  %s4 = inlined_call_operand.hbm [shape: bf16[2,16,128], index: 4, kind: output, shape index: {2}]
  %5 = xla_tuple %s2, %s3, %s4
  %s6 = sld [smem:[#allocation0]]
  $region57: #{tpu_custom_call.1} parent=0
    _
  %s8 = ssub.s32 1, %s6
  %s9 = scalar_select 0, %s8, %s6
  $region1: #{tpu_custom_call.1} parent=0
    #allocation2 [shape = 'u8[8192]{0}', space=vmem, size = 0x2000, scoped, tag = 'output window, operand 0']
    #allocation3 [shape = 's32[2]{0}', space=sflag, size = 0x8, scoped, tag = 'scoped memory for tpu_custom_call.1']
    #allocation4 [shape = 'u8[8192]{0}', space=vmem, size = 0x2000, scoped, tag = 'output window, operand 1']
    #allocation5 [shape = 's32[2]{0}', space=sflag, size = 0x8, scoped, tag = 'scoped memory for tpu_custom_call.1']
    #allocation6 [shape = 'u8[8192]{0}', space=vmem, size = 0x2000, scoped, tag = 'output window, operand 2']
    %10 = vsyncpa [#allocation3], 0
    %s11 = scalar_lea.sflag [#allocation3], 1
    %12 = vsyncpa %s11, 0
    %13 = vsyncpa [#allocation5], 0
    %s14 = scalar_lea.sflag [#allocation5], 1
    %15 = vsyncpa %s14, 0
    loop: start=0, step=1, limit=4
    $region2: #{tpu_custom_call.1} parent=1 // loop_pre_header
      _
    $region3: #{tpu_custom_call.1} parent=1 // loop_header
      %s17 = sphi 0, %s21
      %p18 = scmp.ge.s32.totalorder %s17, 4
      %s24 = sphi 0, %s36
      %s25 = sphi 0, %s32
      %s26 = sphi 0, %s24
      %s27 = sphi 0, %s25
      %s28 = sphi 0, %s26
      %s29 = sphi 0, %s27
      %s41 = sphi 0, %s43
      %s44 = sphi 0, %s41
      %s45 = sphi 0, %s44
      %s61 = sphi 0, %s45
      %s65 = sphi 0, %s65
      %s67 = sphi 0, %s65
      %s68 = sphi 0, %s67
      %s82 = sphi 0, %s68
      %s90 = sphi 0, %s92
      %s93 = sphi 0, %s90
      %s94 = sphi 0, %s93
      %s110 = sphi 0, %s94
      %s118 = sphi 0, %s120
      %s121 = sphi 0, %s118
      %s122 = sphi 0, %s121
      %s138 = sphi 0, %s122
      %s146 = sphi 0, %s148
      %s149 = sphi 0, %s146
      %s150 = sphi 0, %s149
      %s166 = sphi 0, %s150
    $region4: #{tpu_custom_call.1} parent=1 // loop_header_branch
      %20 = sbr.rel (%p18) target = $region8
    $region5: #{tpu_custom_call.1} parent=1 // loop_body
      %s22 = ssub.s32 %s17, 1
      %s23 = ssub.s32 %s17, 2
      %s30 = sadd.s32 1, %s25
      %p31 = scmp.ge.s32.totalorder %s30, 1
      %s32 = scalar_select %p31, 0, %s30
      %s33 = sadd.s32 1, %s24
      %s34 = scalar_select %p31, %s33, %s24
      %p35 = scmp.ge.s32.totalorder %s34, 2
      %s36 = scalar_select %p35, 0, %s34
      %s37 = ssub.s32 %s24, %s36
      %s38 = ssub.s32 %s25, %s32
      %s39 = sor.u32 %s37, %s38
      %p40 = scmp.eq.s32.totalorder %s39, 0
      %s42 = sadd.s32 %s41, 1
      %s43 = scalar_select %p40, %s41, %s42
      %p46 = pneg %p40
      %p47 = scmp.eq.s32.totalorder %s17, 1
      %p48 = por %p46, %p47
      %p49 = scmp.ne.s32.totalorder %s41, %s44
      %p50 = scmp.eq.s32.totalorder %s17, 0
      %p51 = por %p49, %p50
      %p52 = scmp.ne.s32.totalorder %s41, %s44
      %p53 = scmp.eq.s32.totalorder %s22, 1
      %p54 = por %p52, %p53
      %p55 = scmp.ne.s32.totalorder %s44, %s45
      %p56 = scmp.eq.s32.totalorder %s22, 0
      %p57 = por %p55, %p56
      %p58 = scmp.ne.s32.totalorder %s44, %s45
      %p59 = scmp.eq.s32.totalorder %s23, 1
      %p60 = por %p58, %p59
      %p62 = scmp.ne.s32.totalorder %s45, %s61
      %p63 = scmp.eq.s32.totalorder %s23, 0
      %p64 = por %p62, %p63
      %s66 = sadd.s32 %s65, 1
      %p69 = scmp.eq.s32.totalorder %s17, 1
      %p70 = scmp.ne.s32.totalorder %s65, %s67
      %p71 = scmp.eq.s32.totalorder %s17, 0
      %p72 = por %p70, %p71
      %p73 = scmp.ne.s32.totalorder %s65, %s67
      %p74 = scmp.eq.s32.totalorder %s22, 1
      %p75 = por %p73, %p74
      %p76 = scmp.ne.s32.totalorder %s67, %s68
      %p77 = scmp.eq.s32.totalorder %s22, 0
      %p78 = por %p76, %p77
      %p79 = scmp.ne.s32.totalorder %s67, %s68
      %p80 = scmp.eq.s32.totalorder %s23, 1
      %p81 = por %p79, %p80
      %p83 = scmp.ne.s32.totalorder %s68, %s82
      %p84 = scmp.eq.s32.totalorder %s23, 0
      %p85 = por %p83, %p84
      %s86 = ssub.s32 %s24, %s36
      %s87 = ssub.s32 %s25, %s32
      %s88 = sor.u32 %s86, %s87
      %p89 = scmp.eq.s32.totalorder %s88, 0
      %s91 = sadd.s32 %s90, 1
      %s92 = scalar_select %p89, %s90, %s91
      %p95 = pneg %p89
      %p96 = scmp.eq.s32.totalorder %s17, 1
      %p97 = por %p95, %p96
      %p98 = scmp.ne.s32.totalorder %s90, %s93
      %p99 = scmp.eq.s32.totalorder %s17, 0
      %p100 = por %p98, %p99
      %p101 = scmp.ne.s32.totalorder %s90, %s93
      %p102 = scmp.eq.s32.totalorder %s22, 1
      %p103 = por %p101, %p102
      %p104 = scmp.ne.s32.totalorder %s93, %s94
      %p105 = scmp.eq.s32.totalorder %s22, 0
      %p106 = por %p104, %p105
      %p107 = scmp.ne.s32.totalorder %s93, %s94
      %p108 = scmp.eq.s32.totalorder %s23, 1
      %p109 = por %p107, %p108
      %p111 = scmp.ne.s32.totalorder %s94, %s110
      %p112 = scmp.eq.s32.totalorder %s23, 0
      %p113 = por %p111, %p112
      %s114 = ssub.s32 %s24, %s36
      %s115 = ssub.s32 %s25, %s32
      %s116 = sor.u32 %s114, %s115
      %p117 = scmp.eq.s32.totalorder %s116, 0
      %s119 = sadd.s32 %s118, 1
      %s120 = scalar_select %p117, %s118, %s119
      %p123 = pneg %p117
      %p124 = scmp.eq.s32.totalorder %s17, 1
      %p125 = por %p123, %p124
      %p126 = scmp.ne.s32.totalorder %s118, %s121
      %p127 = scmp.eq.s32.totalorder %s17, 0
      %p128 = por %p126, %p127
      %p129 = scmp.ne.s32.totalorder %s118, %s121
      %p130 = scmp.eq.s32.totalorder %s22, 1
      %p131 = por %p129, %p130
      %p132 = scmp.ne.s32.totalorder %s121, %s122
      %p133 = scmp.eq.s32.totalorder %s22, 0
      %p134 = por %p132, %p133
      %p135 = scmp.ne.s32.totalorder %s121, %s122
      %p136 = scmp.eq.s32.totalorder %s23, 1
      %p137 = por %p135, %p136
      %p139 = scmp.ne.s32.totalorder %s122, %s138
      %p140 = scmp.eq.s32.totalorder %s23, 0
      %p141 = por %p139, %p140
      %s142 = ssub.s32 %s24, %s36
      %s143 = ssub.s32 %s25, %s32
      %s144 = sor.u32 %s142, %s143
      %p145 = scmp.eq.s32.totalorder %s144, 0
      %s147 = sadd.s32 %s146, 1
      %s148 = scalar_select %p145, %s146, %s147
      %p151 = pneg %p145
      %p152 = scmp.eq.s32.totalorder %s17, 1
      %p153 = por %p151, %p152
      %p154 = scmp.ne.s32.totalorder %s146, %s149
      %p155 = scmp.eq.s32.totalorder %s17, 0
      %p156 = por %p154, %p155
      %p157 = scmp.ne.s32.totalorder %s146, %s149
      %p158 = scmp.eq.s32.totalorder %s22, 1
      %p159 = por %p157, %p158
      %p160 = scmp.ne.s32.totalorder %s149, %s150
      %p161 = scmp.eq.s32.totalorder %s22, 0
      %p162 = por %p160, %p161
      %p163 = scmp.ne.s32.totalorder %s149, %s150
      %p164 = scmp.eq.s32.totalorder %s23, 1
      %p165 = por %p163, %p164
      %p167 = scmp.ne.s32.totalorder %s150, %s166
      %p168 = scmp.eq.s32.totalorder %s23, 0
      %p169 = por %p167, %p168
      %p170 = scmp.le.s32.totalorder 1, %s17
      %p171 = scmp.lt.s32.totalorder %s17, 3
      %p172 = pnand %p170, %p171
      %p173 = pneg %p172
      // Predicated region
      $region9: #{tpu_custom_call.1} parent=5 // pred_check
        _
      $region10: #{tpu_custom_call.1} parent=5 // pred_check_branch
        %175 = sbr.rel (%p172) target = $region12
      $region11: #{tpu_custom_call.1} parent=5 // pred_region
        %s176 = ssub.s32 %s17, 1
        // Predicated region
        $region13: #{tpu_custom_call.1} parent=11 // pred_check
          %p177 = pneg %p78
        $region14: #{tpu_custom_call.1} parent=11 // pred_check_branch
          %179 = sbr.rel (%p177) target = $region16
        $region15: #{tpu_custom_call.1} parent=11 // pred_region
          _
        $region16: #{tpu_custom_call.1} parent=11 // pred_fallthru
          _
      $region12: #{tpu_custom_call.1} parent=5 // pred_fallthru
        _
      %p180 = scmp.lt.s32.totalorder %s17, 2
      // Predicated region
      $region17: #{tpu_custom_call.1} parent=5 // pred_check
        %p181 = pneg %p180
      $region18: #{tpu_custom_call.1} parent=5 // pred_check_branch
        %183 = sbr.rel (%p181) target = $region20
      $region19: #{tpu_custom_call.1} parent=5 // pred_region
        // Predicated region
        $region21: #{tpu_custom_call.1} parent=19 // pred_check
          %p184 = pneg %p51
        $region22: #{tpu_custom_call.1} parent=19 // pred_check_branch
          %186 = sbr.rel (%p184) target = $region24
        $region23: #{tpu_custom_call.1} parent=19 // pred_region
          %s187 = smul.u32 2, %s25
          %p188 = scmp.lt.s32.totalorder %s24, 1
          %s189 = scalar_select %p188, %s24, 1
          %p190 = scmp.lt.s32.totalorder %s187, 1
          %s191 = scalar_select %p190, %s187, 1
          %s192 = smul.addr %s189, 2
          %s193 = sadd.s32 %s191, %s192
          %s194 = smul.addr %s193, 4
          %s195 = scalar_lea.vmem %s0, %s194
          %s196 = smul.u32 2, %s25
        $region24: #{tpu_custom_call.1} parent=19 // pred_fallthru
          _
      $region20: #{tpu_custom_call.1} parent=5 // pred_fallthru
        _
      %p197 = scmp.le.s32.totalorder 1, %s17
      %p198 = scmp.lt.s32.totalorder %s17, 3
      %p199 = pnand %p197, %p198
      %p200 = pneg %p199
      // Predicated region
      $region25: #{tpu_custom_call.1} parent=5 // pred_check
        _
      $region26: #{tpu_custom_call.1} parent=5 // pred_check_branch
        %202 = sbr.rel (%p199) target = $region28
      $region27: #{tpu_custom_call.1} parent=5 // pred_region
        %s203 = ssub.s32 %s17, 1
        %s204 = smul.u32 2, %s27
        %p205 = scmp.lt.s32.totalorder %s26, 1
        %s206 = scalar_select %p205, %s26, 1
        %p207 = scmp.lt.s32.totalorder %s204, 1
        %s208 = scalar_select %p207, %s204, 1
        %s209 = smul.addr %s206, 2
        %s210 = sadd.s32 %s208, %s209
        %s211 = smul.addr %s210, 4
        %s212 = scalar_lea.vmem %s0, %s211
        %p213 = pneg %p57
        %p214 = pneg %p54
        %p215 = pneg %p78
        %p216 = pneg %p75
        %p217 = pneg %p106
        %p218 = pneg %p103
        %s219 = sand.u32 %s93, 1
        %s220 = scalar_lea.sflag [#allocation3], %s219
        %s221 = sand.u32 %s93, 1
        %s222 = smul.addr %s221, 8
        %s223 = scalar_lea.vmem [#allocation2], %s222
        %p224 = pneg %p134
        %p225 = pneg %p131
        %s226 = sand.u32 %s22, 1
        %s227 = scalar_lea.sflag [#allocation5], %s226
        %s228 = sand.u32 %s121, 1
        %s229 = smul.addr %s228, 8
        %s230 = scalar_lea.vmem [#allocation4], %s229
        %p231 = pneg %p162
        %p232 = pneg %p159
        %s233 = sand.u32 %s22, 1
        %s234 = scalar_lea.sflag [#allocation5], %s233
        %s235 = sand.u32 %s149, 1
        %s236 = smul.addr %s235, 8
        %s237 = scalar_lea.vmem [#allocation6], %s236
        %s238 = smul.u32 2, %s27
        %p239 = scmp.lt.s32.totalorder %s26, 1
        %s240 = scalar_select %p239, %s26, 1
        %p241 = scmp.lt.s32.totalorder %s238, 1
        %s242 = scalar_select %p241, %s238, 1
        %s243 = smul.addr %s240, 2
        %s244 = sadd.s32 %s242, %s243
        %s245 = smul.addr %s244, 4
        %s246 = scalar_lea.vmem %s0, %s245
        %s247 = smul.u32 2, %s27
        %s248 = smul.u32 2, %s27
        %s249 = smul.u32 2, %s27
        %s250 = smul.u32 2, %s27
        %v252 = vld [vmem:[%s246] sm:$0xf]
        %v253 = vld [vmem:[%s246 + $0x4] sm:$0xf]
        %v254 = vld [vmem:[%s1] sm:$0x3]
        %v257 = vunpack.c.l.b16 %v252
        %v258 = vunpack.c.l.b16 %v253
        %v259 = vpack.c.b16 %v258, %v257
        %vm260 = vcmask 23552
        %v262 = vsel %vm260, %v259, 0
        %vm264 = vcmask 1040384
        %vm265 = vcmask 1041408
        %v266 = vsel %vm264, 4294967295, 65535
        %v267 = vsel %vm265, %v266, 0
        %v269 = vand.u32 %v254, %v267
        %271 = vmatprep.subr.bf16.mxu0 0
        %272 = vmatpush1.bf16.msra.mxu0 %v269
        %273 = vmatprep.subr.bf16.mxu0 0
        %274 = vmatpush1.bf16.msra.mxu0 0
        %275 = vmatprep.subr.bf16.mxu0 0
        %276 = vmatpush1.bf16.msra.mxu0 0
        %277 = vmatprep.subr.bf16.mxu0 0
        %278 = vmatpush1.bf16.msra.mxu0 0
        %279 = vmatprep.subr.bf16.mxu0 0
        %280 = vmatpush1.bf16.msra.mxu0 0
        %281 = vmatprep.subr.bf16.mxu0 0
        %282 = vmatpush1.bf16.msra.mxu0 0
        %283 = vmatprep.subr.bf16.mxu0 0
        %284 = vmatpush1.bf16.msra.mxu0 0
        %285 = vmatprep.subr.bf16.mxu0 0
        %286 = vmatpush1.bf16.msra.mxu0 0
        %287 = vmatprep.subr.bf16.mxu0 0
        %288 = vmatpush1.bf16.msra.mxu0 0
        %289 = vmatprep.subr.bf16.mxu0 0
        %290 = vmatpush1.bf16.msra.mxu0 0
        %291 = vmatprep.subr.bf16.mxu0 0
        %292 = vmatpush1.bf16.msra.mxu0 0
        %293 = vmatprep.subr.bf16.mxu0 0
        %294 = vmatpush1.bf16.msra.mxu0 0
        %295 = vmatprep.subr.bf16.mxu0 0
        %296 = vmatpush1.bf16.msra.mxu0 0
        %297 = vmatprep.subr.bf16.mxu0 0
        %298 = vmatpush1.bf16.msra.mxu0 0
        %299 = vmatprep.subr.bf16.mxu0 0
        %300 = vmatpush1.bf16.msra.mxu0 0
        %301 = vmatprep.subr.bf16.mxu0 0
        %302 = vmatpush1.bf16.msra.mxu0 0
        %303 = vmatprep.mubr.bf16.mxu0 0
        %304 = vmatmul.mubr.bf16.gmra.mrb[0].mxu0 %v262
        %v305 = vpop.f32.mrb[0].mxu0
        %v306 = vadd.f32 0.0, %v305
        %v307 = vpop.f32.mrb[0].mxu0
        %v308 = vpop.f32.mrb[0].mxu0
        %v309 = vadd.f32 0.0, %v308
        %v310 = vpop.f32.mrb[0].mxu0
        %311 = vdwg.mxu0
        %v312 = vpack.c.bf16 %v309, %v306
        %v314 = vunpack.c.l.b16 %v312
        %v315 = vunpack.c.h.b16 %v312
        %v316 = vpack.c.b16 %v314, %v314
        %v317 = vpack.c.b16 %v315, %v315
        %320 = vst [vmem:[%s223] sm:$0xf] %v316
        %321 = vst [vmem:[%s223 + $0x4] sm:$0xf] %v317
        %v322 = vld [vmem:[%s1 + $0x2] sm:$0x3]
        %v324 = vand.u32 %v322, %v267
        %326 = vmatprep.subr.bf16.mxu0 0
        %327 = vmatpush1.bf16.msra.mxu0 %v324
        %328 = vmatprep.subr.bf16.mxu0 0
        %329 = vmatpush1.bf16.msra.mxu0 0
        %330 = vmatprep.subr.bf16.mxu0 0
        %331 = vmatpush1.bf16.msra.mxu0 0
        %332 = vmatprep.subr.bf16.mxu0 0
        %333 = vmatpush1.bf16.msra.mxu0 0
        %334 = vmatprep.subr.bf16.mxu0 0
        %335 = vmatpush1.bf16.msra.mxu0 0
        %336 = vmatprep.subr.bf16.mxu0 0
        %337 = vmatpush1.bf16.msra.mxu0 0
        %338 = vmatprep.subr.bf16.mxu0 0
        %339 = vmatpush1.bf16.msra.mxu0 0
        %340 = vmatprep.subr.bf16.mxu0 0
        %341 = vmatpush1.bf16.msra.mxu0 0
        %342 = vmatprep.subr.bf16.mxu0 0
        %343 = vmatpush1.bf16.msra.mxu0 0
        %344 = vmatprep.subr.bf16.mxu0 0
        %345 = vmatpush1.bf16.msra.mxu0 0
        %346 = vmatprep.subr.bf16.mxu0 0
        %347 = vmatpush1.bf16.msra.mxu0 0
        %348 = vmatprep.subr.bf16.mxu0 0
        %349 = vmatpush1.bf16.msra.mxu0 0
        %350 = vmatprep.subr.bf16.mxu0 0
        %351 = vmatpush1.bf16.msra.mxu0 0
        %352 = vmatprep.subr.bf16.mxu0 0
        %353 = vmatpush1.bf16.msra.mxu0 0
        %354 = vmatprep.subr.bf16.mxu0 0
        %355 = vmatpush1.bf16.msra.mxu0 0
        %356 = vmatprep.subr.bf16.mxu0 0
        %357 = vmatpush1.bf16.msra.mxu0 0
        %358 = vmatprep.mubr.bf16.mxu0 0
        %359 = vmatmul.mubr.bf16.gmra.mrb[0].mxu0 %v262
        %v360 = vpop.f32.mrb[0].mxu0
        %v361 = vadd.f32 0.0, %v360
        %v362 = vpop.f32.mrb[0].mxu0
        %v363 = vpop.f32.mrb[0].mxu0
        %v364 = vadd.f32 0.0, %v363
        %v365 = vpop.f32.mrb[0].mxu0
        %366 = vdwg.mxu0
        %v367 = vpack.c.bf16 %v364, %v361
        %v369 = vunpack.c.l.b16 %v367
        %v370 = vunpack.c.h.b16 %v367
        %v371 = vpack.c.b16 %v369, %v369
        %v372 = vpack.c.b16 %v370, %v370
        %375 = vst [vmem:[%s230] sm:$0xf] %v371
        %376 = vst [vmem:[%s230 + $0x4] sm:$0xf] %v372
        %v377 = vld [vmem:[%s1 + $0x4] sm:$0x3]
        %v379 = vand.u32 %v377, %v267
        %381 = vmatprep.subr.bf16.mxu0 0
        %382 = vmatpush1.bf16.msra.mxu0 %v379
        %383 = vmatprep.subr.bf16.mxu0 0
        %384 = vmatpush1.bf16.msra.mxu0 0
        %385 = vmatprep.subr.bf16.mxu0 0
        %386 = vmatpush1.bf16.msra.mxu0 0
        %387 = vmatprep.subr.bf16.mxu0 0
        %388 = vmatpush1.bf16.msra.mxu0 0
        %389 = vmatprep.subr.bf16.mxu0 0
        %390 = vmatpush1.bf16.msra.mxu0 0
        %391 = vmatprep.subr.bf16.mxu0 0
        %392 = vmatpush1.bf16.msra.mxu0 0
        %393 = vmatprep.subr.bf16.mxu0 0
        %394 = vmatpush1.bf16.msra.mxu0 0
        %395 = vmatprep.subr.bf16.mxu0 0
        %396 = vmatpush1.bf16.msra.mxu0 0
        %397 = vmatprep.subr.bf16.mxu0 0
        %398 = vmatpush1.bf16.msra.mxu0 0
        %399 = vmatprep.subr.bf16.mxu0 0
        %400 = vmatpush1.bf16.msra.mxu0 0
        %401 = vmatprep.subr.bf16.mxu0 0
        %402 = vmatpush1.bf16.msra.mxu0 0
        %403 = vmatprep.subr.bf16.mxu0 0
        %404 = vmatpush1.bf16.msra.mxu0 0
        %405 = vmatprep.subr.bf16.mxu0 0
        %406 = vmatpush1.bf16.msra.mxu0 0
        %407 = vmatprep.subr.bf16.mxu0 0
        %408 = vmatpush1.bf16.msra.mxu0 0
        %409 = vmatprep.subr.bf16.mxu0 0
        %410 = vmatpush1.bf16.msra.mxu0 0
        %411 = vmatprep.subr.bf16.mxu0 0
        %412 = vmatpush1.bf16.msra.mxu0 0
        %413 = vmatprep.mubr.bf16.mxu0 0
        %414 = vmatmul.mubr.bf16.gmra.mrb[0].mxu0 %v262
        %v415 = vpop.f32.mrb[0].mxu0
        %v416 = vadd.f32 0.0, %v415
        %v417 = vpop.f32.mrb[0].mxu0
        %v418 = vpop.f32.mrb[0].mxu0
        %v419 = vadd.f32 0.0, %v418
        %v420 = vpop.f32.mrb[0].mxu0
        %421 = vdwg.mxu0
        %v422 = vpack.c.bf16 %v419, %v416
        %v424 = vunpack.c.l.b16 %v422
        %v425 = vunpack.c.h.b16 %v422
        %v426 = vpack.c.b16 %v424, %v424
        %v427 = vpack.c.b16 %v425, %v425
        %430 = vst [vmem:[%s237] sm:$0xf] %v426
        %431 = vst [vmem:[%s237 + $0x4] sm:$0xf] %v427
        %s432 = sand.u32 %s93, 1
        %s433 = scalar_lea.sflag [#allocation3], %s432
        %s434 = sand.u32 %s93, 1
        %s435 = smul.addr %s434, 8
        %s436 = scalar_lea.vmem [#allocation2], %s435
        %s437 = sand.u32 %s22, 1
        %s438 = scalar_lea.sflag [#allocation5], %s437
        %s439 = sand.u32 %s121, 1
        %s440 = smul.addr %s439, 8
        %s441 = scalar_lea.vmem [#allocation4], %s440
        %s442 = sand.u32 %s22, 1
        %s443 = scalar_lea.sflag [#allocation5], %s442
        %s444 = sand.u32 %s149, 1
        %s445 = smul.addr %s444, 8
        %s446 = scalar_lea.vmem [#allocation6], %s445
        // Predicated region
        $region29: #{tpu_custom_call.1} parent=27 // pred_check
          %p447 = pneg %p103
        $region30: #{tpu_custom_call.1} parent=27 // pred_check_branch
          %449 = sbr.rel (%p447) target = $region32
        $region31: #{tpu_custom_call.1} parent=27 // pred_region
          %s450 = smul.u32 2, %s27
          %s452 = ssub.s32 128, 128
          %453 = vsyncadd %s433, %s452
          %s454 = smul.addr %s26, 2
          %s455 = sadd.s32 %s450, %s454
          %s456 = smul.addr %s455, 64
          %s457 = scalar_lea.hbm %s2, %s456
          %s458 = sshll.u32 %s436, 4
          %s459 = int_to_ptr.vmem [resolvable:$true] %s458
          %464 = dma.vmem_to_hbm [thread:$0]  %s459, 128, %s457, %s433, 64, 64, 4
        $region32: #{tpu_custom_call.1} parent=27 // pred_fallthru
          _
        // Predicated region
        $region33: #{tpu_custom_call.1} parent=27 // pred_check
          %p465 = pneg %p131
        $region34: #{tpu_custom_call.1} parent=27 // pred_check_branch
          %467 = sbr.rel (%p465) target = $region36
        $region35: #{tpu_custom_call.1} parent=27 // pred_region
          %s468 = smul.u32 2, %s27
          %s470 = ssub.s32 128, 128
          %471 = vsyncadd %s438, %s470
          %s472 = smul.addr %s26, 2
          %s473 = sadd.s32 %s468, %s472
          %s474 = smul.addr %s473, 64
          %s475 = scalar_lea.hbm %s3, %s474
          %s476 = sshll.u32 %s441, 4
          %s477 = int_to_ptr.vmem [resolvable:$true] %s476
          %482 = dma.vmem_to_hbm [thread:$0]  %s477, 128, %s475, %s438, 64, 64, 4
        $region36: #{tpu_custom_call.1} parent=27 // pred_fallthru
          _
        // Predicated region
        $region37: #{tpu_custom_call.1} parent=27 // pred_check
          %p483 = pneg %p159
        $region38: #{tpu_custom_call.1} parent=27 // pred_check_branch
          %485 = sbr.rel (%p483) target = $region40
        $region39: #{tpu_custom_call.1} parent=27 // pred_region
          %s486 = smul.u32 2, %s27
          %s488 = ssub.s32 128, 128
          %489 = vsyncadd %s443, %s488
          %s490 = smul.addr %s26, 2
          %s491 = sadd.s32 %s486, %s490
          %s492 = smul.addr %s491, 64
          %s493 = scalar_lea.hbm %s4, %s492
          %s494 = sshll.u32 %s446, 4
          %s495 = int_to_ptr.vmem [resolvable:$true] %s494
          %500 = dma.vmem_to_hbm [thread:$0]  %s495, 128, %s493, %s443, 64, 64, 4
        $region40: #{tpu_custom_call.1} parent=27 // pred_fallthru
          _
      $region28: #{tpu_custom_call.1} parent=5 // pred_fallthru
        _
      %p501 = scmp.le.s32.totalorder 2, %s17
      // Predicated region
      $region41: #{tpu_custom_call.1} parent=5 // pred_check
        %p502 = pneg %p501
      $region42: #{tpu_custom_call.1} parent=5 // pred_check_branch
        %504 = sbr.rel (%p502) target = $region44
      $region43: #{tpu_custom_call.1} parent=5 // pred_region
        %s505 = ssub.s32 %s17, 2
        // Predicated region
        $region45: #{tpu_custom_call.1} parent=43 // pred_check
          %p506 = pneg %p109
        $region46: #{tpu_custom_call.1} parent=43 // pred_check_branch
          %508 = sbr.rel (%p506) target = $region48
        $region47: #{tpu_custom_call.1} parent=43 // pred_region
          %s509 = sand.u32 %s94, 1
          %s510 = scalar_lea.sflag [#allocation3], %s509
          %s511 = sand.u32 %s94, 1
          %s512 = smul.addr %s511, 8
          %s513 = scalar_lea.vmem [#allocation2], %s512
          %514 = dma.done %s510, 128
        $region48: #{tpu_custom_call.1} parent=43 // pred_fallthru
          _
        // Predicated region
        $region49: #{tpu_custom_call.1} parent=43 // pred_check
          %p515 = pneg %p137
        $region50: #{tpu_custom_call.1} parent=43 // pred_check_branch
          %517 = sbr.rel (%p515) target = $region52
        $region51: #{tpu_custom_call.1} parent=43 // pred_region
          %s518 = sand.u32 %s23, 1
          %s519 = scalar_lea.sflag [#allocation5], %s518
          %s520 = sand.u32 %s122, 1
          %s521 = smul.addr %s520, 8
          %s522 = scalar_lea.vmem [#allocation4], %s521
          %523 = dma.done %s519, 128
        $region52: #{tpu_custom_call.1} parent=43 // pred_fallthru
          _
        // Predicated region
        $region53: #{tpu_custom_call.1} parent=43 // pred_check
          %p524 = pneg %p165
        $region54: #{tpu_custom_call.1} parent=43 // pred_check_branch
          %526 = sbr.rel (%p524) target = $region56
        $region55: #{tpu_custom_call.1} parent=43 // pred_region
          %s527 = sand.u32 %s23, 1
          %s528 = scalar_lea.sflag [#allocation5], %s527
          %s529 = sand.u32 %s150, 1
          %s530 = smul.addr %s529, 8
          %s531 = scalar_lea.vmem [#allocation6], %s530
          %532 = dma.done %s528, 128
        $region56: #{tpu_custom_call.1} parent=43 // pred_fallthru
          _
      $region44: #{tpu_custom_call.1} parent=5 // pred_fallthru
        _
    $region6: #{tpu_custom_call.1} parent=1 // loop_footer
      %s21 = sadd.s32 1, %s17
    $region7: #{tpu_custom_call.1} parent=1 // loop_footer_branch
      %16 = sbr.rel target = $region3
    $region8: #{tpu_custom_call.1} parent=1 // loop_exit
      _
    %533 = vsyncpa [#allocation3], 1
    %s534 = scalar_lea.sflag [#allocation3], 1
    %535 = vsyncpa %s534, 1
    %536 = vsyncpa [#allocation5], 1
    %s537 = scalar_lea.sflag [#allocation5], 1
    %538 = vsyncpa %s537, 1

</llo_original>
